<compile_context>
chip_gen: v6e
topology: v6e:2x2x1
jax: 0.10.0
libtpu: 0.0.40
codegen_flags: <defaults>
</compile_context>

<pallas_src>
import functools

import jax
import jax.numpy as jnp
from jax import lax
from jax.experimental import pallas as pl
from jax.experimental.pallas import tpu as pltpu


def _round_up(v, m):
    return -(-v // m) * m


# --------------------------------------------------------------------------
# Kernel 1: fused 1x1-conv projections.
#   y = W_all @ x + b_all   with  W_all = [Wq_pad; Wk_pad; Wv_aug]  (bf16)
# Row layout of y:
#   [0, C8p)        q   rows (real rows [0, C8), zero pad; when N is padded
#                       row C8p-1 is a "mask channel" with bias 1)
#   [C8p, 2*C8p)    k   rows (real rows [0, C8), zero pad; when N is padded
#                       row C8p-1 is set to 0 / -1e9 per key column here)
#   [2*C8p, Ctot)   v_aug rows (real rows [0, C), then a constant-one row
#                       that lets kernel 2 read the softmax denominator out
#                       of the MXU accumulator, then zero pad to 16-multiple)
# --------------------------------------------------------------------------
def qkv_proj_kernel(n_valid, needs_mask, x_ref, w_ref, b_ref,
                    q_ref, k_ref, v_ref):
    # Single MXU pass per x tile (bf16 operands, f32 accumulation + f32 bias).
    y = jnp.dot(w_ref[...], x_ref[0],
                preferred_element_type=jnp.float32) + b_ref[...]
    cq = q_ref.shape[1]
    ck = k_ref.shape[1]

    q_ref[0] = y[:cq].astype(q_ref.dtype)

    kv = y[cq:cq + ck]
    if needs_mask:
        # Key-padding mask: row ck-1 of k is 0 for valid columns, -1e9 for
        # padded columns; the matching q row is the constant 1 (via bias), so
        # padded keys get energy ~ -1e9 in kernel 2 with no per-step masking.
        tn = x_ref.shape[2]
        row = lax.broadcasted_iota(jnp.int32, (ck, tn), 0)
        col = pl.program_id(1) * tn + lax.broadcasted_iota(jnp.int32, (ck, tn), 1)
        kv = jnp.where((row == ck - 1) & (col >= n_valid),
                       jnp.float32(-1e9), kv)
    k_ref[0] = kv.astype(k_ref.dtype)
    v_ref[0] = y[cq + ck:].astype(v_ref.dtype)


# --------------------------------------------------------------------------
# Kernel 2: flash-style position attention + gamma * out + x residual.
# --------------------------------------------------------------------------
def pam_flash_kernel(q_ref, k_ref, v_ref, x_ref, gamma_ref, out_ref,
                     m_sc, acc_sc):
    ki = pl.program_id(2)

    @pl.when(ki == 0)
    def _():
        m_sc[...] = jnp.full(m_sc.shape, -jnp.inf, dtype=m_sc.dtype)
        acc_sc[...] = jnp.zeros(acc_sc.shape, dtype=acc_sc.dtype)

    q = q_ref[0]                                   # (C8p, tq) bf16
    k = k_ref[0]                                   # (C8p, tk) bf16
    v = v_ref[0]                                   # (Cvp, tk) bf16 (v rows, ones row, pad)

    # e[j, i] = <k_j, q_i>: contract the shared channel (sublane) dim; keys on
    # sublanes / queries on lanes of e, bf16 MXU operands, f32 accumulation.
    e = lax.dot_general(k, q, dimension_numbers=(((0,), (0,)), ((), ())),
                        preferred_element_type=jnp.float32)       # (tk, tq)

    m_prev = m_sc[...]                                            # (1, tq)
    m_new = jnp.maximum(m_prev, jnp.max(e, axis=0, keepdims=True))
    alpha = jnp.exp(m_prev - m_new)                               # (1, tq) f32
    # bf16 exp over the score tile (EUP bf16 path on v6e/v7x); the running
    # denominator l still accumulates in f32 through the MXU below.
    p = jnp.exp((e - m_new).astype(jnp.bfloat16))                 # (tk, tq) bf16

    # One MXU matmul updates both the attention accumulator (rows [0, C)) and
    # the softmax denominator (the "ones" row of v_aug, row C).
    acc_sc[...] = alpha * acc_sc[...] + jnp.dot(
        v, p, preferred_element_type=jnp.float32)                 # (Cvp, tq)
    m_sc[...] = m_new

    @pl.when(ki == pl.num_programs(2) - 1)
    def _():
        c_out = out_ref.shape[1]
        inv_l = pl.reciprocal(acc_sc[c_out:c_out + 1, :], approx=True)  # (1, tq)
        attn_out = acc_sc[:c_out, :] * inv_l                            # (C, tq)
        out_ref[0] = (gamma_ref[0] * attn_out + x_ref[0]).astype(out_ref.dtype)


# --------------------------------------------------------------------------
# Wrapper
# --------------------------------------------------------------------------
def _pick_tile(n_padded, cap):
    """Largest multiple of 128 that divides n_padded and is <= cap."""
    t = min(cap, n_padded)
    t -= t % 128
    t = max(t, 128)
    while n_padded % t:
        t -= 128
    return t


def pam_forward(x_nchw, wq, bq, wk, bk, wv, bv, gamma, *,
                tq=None, tk=None, tn=None):
    """DANet PAM_Module forward.

    x_nchw : (B, C, H, W)
    wq, wk : (C//8, C)   (torch Conv2d(C, C//8, 1) weight, 1x1 kernel squeezed)
    bq, bk : (C//8,)
    wv     : (C, C)
    bv     : (C,)
    gamma  : (1,)
    """
    B, C, H, W = x_nchw.shape
    N = H * W
    Np = _round_up(N, 128)                 # lane-dense spatial axis
    needs_mask = Np != N

    f32 = jnp.float32
    C8 = wq.shape[0]
    # q/k channels padded to a multiple of 16 (bf16 sublane packing); reserve
    # one extra channel for the key-padding mask when N is padded.
    C8p = _round_up(C8 + (1 if needs_mask else 0), 16)
    Cvp = _round_up(C + 1, 16)             # v rows + constant-one row (for l)
    Ctot = 2 * C8p + Cvp

    # Stacked projection weights / biases -> one MXU pass in kernel 1.
    w_all = jnp.zeros((Ctot, C), f32)
    w_all = w_all.at[0:C8].set(wq.astype(f32))
    w_all = w_all.at[C8p:C8p + C8].set(wk.astype(f32))
    w_all = w_all.at[2 * C8p:2 * C8p + C].set(wv.astype(f32))
    b_all = jnp.zeros((Ctot,), f32)
    b_all = b_all.at[0:C8].set(bq.astype(f32))
    b_all = b_all.at[C8p:C8p + C8].set(bk.astype(f32))
    b_all = b_all.at[2 * C8p:2 * C8p + C].set(bv.astype(f32))
    b_all = b_all.at[2 * C8p + C].set(1.0)      # ones row of v_aug -> softmax denom
    if needs_mask:
        b_all = b_all.at[C8p - 1].set(1.0)      # q mask channel = 1 everywhere
    w_all_bf = w_all.astype(jnp.bfloat16)
    b_all2 = b_all.reshape(Ctot, 1)

    # Tile sizes: large tq (fewer k/v re-reads), bounded tk (score-tile size).
    tq = _pick_tile(Np, 1024) if tq is None else tq
    tk = _pick_tile(Np, 256) if tk is None else tk
    tn = _pick_tile(Np, 512) if tn is None else tn
    for t in (tq, tk, tn):
        assert t % 128 == 0 and Np % t == 0

    x_cn = x_nchw.reshape(B, C, N).astype(f32)   # free reshape, no HBM transpose
    if needs_mask:
        x_cn = jnp.pad(x_cn, ((0, 0), (0, 0), (0, Np - N)))
    x_bf = x_cn.astype(jnp.bfloat16)

    # ---- kernel 1: fused q/k/v_aug projections -----------------------------
    q, k, vaug = pl.pallas_call(
        functools.partial(qkv_proj_kernel, N, needs_mask),
        out_shape=(jax.ShapeDtypeStruct((B, C8p, Np), jnp.bfloat16),
                   jax.ShapeDtypeStruct((B, C8p, Np), jnp.bfloat16),
                   jax.ShapeDtypeStruct((B, Cvp, Np), jnp.bfloat16)),
        grid_spec=pltpu.PrefetchScalarGridSpec(
            num_scalar_prefetch=0,
            grid=(B, Np // tn),
            in_specs=[
                pl.BlockSpec((1, C, tn), lambda b, n: (b, 0, n)),   # x (bf16)
                pl.BlockSpec((Ctot, C), lambda b, n: (0, 0)),       # stacked W
                pl.BlockSpec((Ctot, 1), lambda b, n: (0, 0)),       # stacked b
            ],
            out_specs=[
                pl.BlockSpec((1, C8p, tn), lambda b, n: (b, 0, n)),
                pl.BlockSpec((1, C8p, tn), lambda b, n: (b, 0, n)),
                pl.BlockSpec((1, Cvp, tn), lambda b, n: (b, 0, n)),
            ]),
        compiler_params=pltpu.CompilerParams(
            dimension_semantics=("parallel", "parallel"),
            vmem_limit_bytes=32 * 1024 * 1024),   # explicit (v5e default is 16 MiB)
    )(x_bf, w_all_bf, b_all2)

    # ---- kernel 2: tiled attention with online softmax ---------------------
    flops = 2 * B * Np * Np * (C8p + Cvp)
    bytes_accessed = (2 * B * C8p * Np + B * Cvp * Np) * 2 + 2 * B * C * Np * 4
    out_cn = pl.pallas_call(
        pam_flash_kernel,
        out_shape=jax.ShapeDtypeStruct((B, C, Np), f32),
        grid_spec=pltpu.PrefetchScalarGridSpec(
            num_scalar_prefetch=0,
            grid=(B, Np // tq, Np // tk),
            in_specs=[
                pl.BlockSpec((1, C8p, tq), lambda b, qi, ki: (b, 0, qi)),  # q
                pl.BlockSpec((1, C8p, tk), lambda b, qi, ki: (b, 0, ki)),  # k
                pl.BlockSpec((1, Cvp, tk), lambda b, qi, ki: (b, 0, ki)),  # v_aug
                pl.BlockSpec((1, C, tq), lambda b, qi, ki: (b, 0, qi)),    # x
                pl.BlockSpec(memory_space=pltpu.MemorySpace.SMEM),         # gamma
            ],
            out_specs=pl.BlockSpec((1, C, tq), lambda b, qi, ki: (b, 0, qi)),
            scratch_shapes=[
                pltpu.VMEM((1, tq), jnp.float32),     # running max m
                pltpu.VMEM((Cvp, tq), jnp.float32),   # f32 acc (+ l in row C)
            ]),
        input_output_aliases={3: 0},                  # x block aliases out block
        compiler_params=pltpu.CompilerParams(
            dimension_semantics=("parallel", "parallel", "arbitrary"),
            vmem_limit_bytes=48 * 1024 * 1024),       # fits v7x's 64 MiB physical
        cost_estimate=pl.CostEstimate(
            flops=int(flops),
            transcendentals=int(B * Np * Np),
            bytes_accessed=int(bytes_accessed)),
    )(q, k, vaug, x_cn, gamma.astype(f32))

    if needs_mask:
        out_cn = out_cn[:, :, :N]
    return out_cn.reshape(B, C, H, W)


# --------------------------------------------------------------------------
# Pure-JAX reference matching the PyTorch PAM_Module.forward
# --------------------------------------------------------------------------
def pam_reference(x_nchw, wq, bq, wk, bk, wv, bv, gamma):
    B, C, H, W = x_nchw.shape
    N = H * W
    xf = x_nchw.reshape(B, C, N)
    q = jnp.einsum("oc,bcn->bon", wq, xf) + bq[None, :, None]   # (B, C8, N)
    k = jnp.einsum("oc,bcn->bon", wk, xf) + bk[None, :, None]   # (B, C8, N)
    v = jnp.einsum("oc,bcn->bon", wv, xf) + bv[None, :, None]   # (B, C,  N)
    energy = jnp.einsum("bci,bcj->bij", q, k)                   # (B, N, N)
    attn = jax.nn.softmax(energy, axis=-1)
    out = jnp.einsum("bcj,bij->bci", v, attn)                   # (B, C, N)
    out = gamma[0] * out + xf
    return out.reshape(B, C, H, W)


if __name__ == "__main__":
    B, C = 2, 32                    # in_dim=32 -> query/key channels = 4
    C8 = C // 8

    key = jax.random.PRNGKey(0)
    kx, kwq, kbq, kwk, kbk, kwv, kbv, kx2 = jax.random.split(key, 8)

    # Conv2d weights in torch (out, in) layout after squeezing the 1x1 kernel.
    wq = 0.1 * jax.random.normal(kwq, (C8, C), dtype=jnp.float32)
    bq = 0.1 * jax.random.normal(kbq, (C8,), dtype=jnp.float32)
    wk = 0.1 * jax.random.normal(kwk, (C8, C), dtype=jnp.float32)
    bk = 0.1 * jax.random.normal(kbk, (C8,), dtype=jnp.float32)
    wv = 0.1 * jax.random.normal(kwv, (C, C), dtype=jnp.float32)
    bv = 0.1 * jax.random.normal(kbv, (C,), dtype=jnp.float32)
    # PyTorch inits gamma = 0; use a nonzero value so the attention path
    # actually contributes to the tested output.
    gamma = jnp.array([0.5], dtype=jnp.float32)

    # Case 1: N = 256 (multiple of 128). Small explicit tiles force a real
    # 2x2 (q-tile, kv-tile) grid so the online-softmax loop is exercised.
    H = W = 16
    x = jax.random.normal(kx, (B, C, H, W), dtype=jnp.float32)
    ref = pam_reference(x, wq, bq, wk, bk, wv, bv, gamma)
    out = pam_forward(x, wq, bq, wk, bk, wv, bv, gamma, tq=128, tk=128, tn=128)
    out = jax.block_until_ready(out)
    assert out.shape == (B, C, H, W)
    # bf16 MXU operands + bf16 exp + approx reciprocal -> loosened tolerance.
    assert jnp.allclose(out, ref, atol=2e-2, rtol=2e-2), (
        float(jnp.max(jnp.abs(out - ref))))

    # Case 2: N = 144 (NOT a multiple of 128) exercises the padded-N /
    # masked-key path with the default tile picker.
    H2 = W2 = 12
    x2 = jax.random.normal(kx2, (B, C, H2, W2), dtype=jnp.float32)
    ref2 = pam_reference(x2, wq, bq, wk, bk, wv, bv, gamma)
    out2 = pam_forward(x2, wq, bq, wk, bk, wv, bv, gamma)
    out2 = jax.block_until_ready(out2)
    assert out2.shape == (B, C, H2, W2)
    assert jnp.allclose(out2, ref2, atol=2e-2, rtol=2e-2), (
        float(jnp.max(jnp.abs(out2 - ref2))))

    print("KERNEL_OK")
</pallas_src>

<mosaic_0001>
module attributes {stable_mosaic.version = 11 : i64} {
  func.func @qkv_proj_kernel(%arg0: i32, %arg1: i32, %arg2: memref<1x32x128xbf16, #tpu.memory_space<vmem>>, %arg3: memref<80x32xbf16, #tpu.memory_space<vmem>>, %arg4: memref<80x1xf32, #tpu.memory_space<vmem>>, %arg5: memref<1x16x128xbf16, #tpu.memory_space<vmem>>, %arg6: memref<1x16x128xbf16, #tpu.memory_space<vmem>>, %arg7: memref<1x48x128xbf16, #tpu.memory_space<vmem>>) attributes {dimension_semantics = [#tpu.dimension_semantics<parallel>, #tpu.dimension_semantics<parallel>], iteration_bounds = array<i64: 2, 2>, scalar_prefetch = 0 : i64, scratch_operands = 0 : i64, tpu.core_type = #tpu.core_type<tc>, window_params = [{transform_indices = @transform_0, window_bounds = array<i64: 1, 32, 128>}, {pipeline_mode = #tpu.pipeline_mode<synchronous>, transform_indices = @transform_1, window_bounds = array<i64: 80, 32>}, {pipeline_mode = #tpu.pipeline_mode<synchronous>, transform_indices = @transform_2, window_bounds = array<i64: 80, 1>}, {transform_indices = @transform_3, window_bounds = array<i64: 1, 16, 128>}, {transform_indices = @transform_4, window_bounds = array<i64: 1, 16, 128>}, {transform_indices = @transform_5, window_bounds = array<i64: 1, 48, 128>}]} {
    %c0 = arith.constant 0 : index
    %c0_0 = arith.constant 0 : index
    %0 = vector.load %arg3[%c0, %c0_0] : memref<80x32xbf16, #tpu.memory_space<vmem>>, vector<80x32xbf16>
    %c0_1 = arith.constant 0 : index
    %c0_2 = arith.constant 0 : index
    %c0_3 = arith.constant 0 : index
    %1 = vector.load %arg2[%c0_1, %c0_2, %c0_3] : memref<1x32x128xbf16, #tpu.memory_space<vmem>>, vector<1x32x128xbf16>
    %2 = vector.shape_cast %1 : vector<1x32x128xbf16> to vector<32x128xbf16>
    %cst = arith.constant dense<0.000000e+00> : vector<80x128xf32>
    %3 = tpu.matmul %0, %2, %cst {dimension_numbers = #tpu.dot_dimension_numbers<[1], [0], [0], [1], [0, 0, 1, 1], [], []>} : vector<80x32xbf16>, vector<32x128xbf16>, vector<80x128xf32> -> vector<80x128xf32>
    %c0_4 = arith.constant 0 : index
    %c0_5 = arith.constant 0 : index
    %4 = vector.load %arg4[%c0_4, %c0_5] : memref<80x1xf32, #tpu.memory_space<vmem>>, vector<80x1xf32>
    %5 = vector.broadcast %4 : vector<80x1xf32> to vector<80x128xf32>
    %6 = arith.addf %3, %5 : vector<80x128xf32>
    %7 = vector.extract_strided_slice %6 {offsets = [0, 0], sizes = [16, 128], strides = [1, 1]} : vector<80x128xf32> to vector<16x128xf32>
    %8 = arith.truncf %7 : vector<16x128xf32> to vector<16x128xbf16>
    %c0_6 = arith.constant 0 : index
    %c0_7 = arith.constant 0 : index
    %c0_8 = arith.constant 0 : index
    %9 = vector.load %arg5[%c0_6, %c0_7, %c0_8] : memref<1x16x128xbf16, #tpu.memory_space<vmem>>, vector<1x16x128xbf16>
    %10 = vector.shape_cast %9 : vector<1x16x128xbf16> to vector<16x128xbf16>
    %11 = vector.shape_cast %8 : vector<16x128xbf16> to vector<1x16x128xbf16>
    tpu.vector_store %arg5[%c0_6, %c0_7, %c0_8], %11 {strides = array<i32>} : memref<1x16x128xbf16, #tpu.memory_space<vmem>>, vector<1x16x128xbf16>,
    %12 = vector.extract_strided_slice %6 {offsets = [16, 0], sizes = [16, 128], strides = [1, 1]} : vector<80x128xf32> to vector<16x128xf32>
    %13 = arith.truncf %12 : vector<16x128xf32> to vector<16x128xbf16>
    %c0_9 = arith.constant 0 : index
    %c0_10 = arith.constant 0 : index
    %c0_11 = arith.constant 0 : index
    %14 = vector.load %arg6[%c0_9, %c0_10, %c0_11] : memref<1x16x128xbf16, #tpu.memory_space<vmem>>, vector<1x16x128xbf16>
    %15 = vector.shape_cast %14 : vector<1x16x128xbf16> to vector<16x128xbf16>
    %16 = vector.shape_cast %13 : vector<16x128xbf16> to vector<1x16x128xbf16>
    tpu.vector_store %arg6[%c0_9, %c0_10, %c0_11], %16 {strides = array<i32>} : memref<1x16x128xbf16, #tpu.memory_space<vmem>>, vector<1x16x128xbf16>,
    %17 = vector.extract_strided_slice %6 {offsets = [32, 0], sizes = [48, 128], strides = [1, 1]} : vector<80x128xf32> to vector<48x128xf32>
    %18 = arith.truncf %17 : vector<48x128xf32> to vector<48x128xbf16>
    %c0_12 = arith.constant 0 : index
    %c0_13 = arith.constant 0 : index
    %c0_14 = arith.constant 0 : index
    %19 = vector.load %arg7[%c0_12, %c0_13, %c0_14] : memref<1x48x128xbf16, #tpu.memory_space<vmem>>, vector<1x48x128xbf16>
    %20 = vector.shape_cast %19 : vector<1x48x128xbf16> to vector<48x128xbf16>
    %21 = vector.shape_cast %18 : vector<48x128xbf16> to vector<1x48x128xbf16>
    tpu.vector_store %arg7[%c0_12, %c0_13, %c0_14], %21 {strides = array<i32>} : memref<1x48x128xbf16, #tpu.memory_space<vmem>>, vector<1x48x128xbf16>,
    return
  }
  func.func @transform_0(%arg0: i32, %arg1: i32) -> (i32, i32, i32) {
    %c0_i32 = arith.constant 0 : i32
    %c0_i32_0 = arith.constant 0 : i32
    return %arg0, %c0_i32, %arg1 : i32, i32, i32
  }
  func.func @transform_1(%arg0: i32, %arg1: i32) -> (i32, i32) {
    %c0_i32 = arith.constant 0 : i32
    %c0_i32_0 = arith.constant 0 : i32
    %c0_i32_1 = arith.constant 0 : i32
    return %c0_i32, %c0_i32_0 : i32, i32
  }
  func.func @transform_2(%arg0: i32, %arg1: i32) -> (i32, i32) {
    %c0_i32 = arith.constant 0 : i32
    %c0_i32_0 = arith.constant 0 : i32
    %c0_i32_1 = arith.constant 0 : i32
    return %c0_i32, %c0_i32_0 : i32, i32
  }
  func.func @transform_3(%arg0: i32, %arg1: i32) -> (i32, i32, i32) {
    %c0_i32 = arith.constant 0 : i32
    %c0_i32_0 = arith.constant 0 : i32
    return %arg0, %c0_i32, %arg1 : i32, i32, i32
  }
  func.func @transform_4(%arg0: i32, %arg1: i32) -> (i32, i32, i32) {
    %c0_i32 = arith.constant 0 : i32
    %c0_i32_0 = arith.constant 0 : i32
    return %arg0, %c0_i32, %arg1 : i32, i32, i32
  }
  func.func @transform_5(%arg0: i32, %arg1: i32) -> (i32, i32, i32) {
    %c0_i32 = arith.constant 0 : i32
    %c0_i32_0 = arith.constant 0 : i32
    return %arg0, %c0_i32, %arg1 : i32, i32, i32
  }
}

</mosaic_0001>

<llo_original>
// kernel: tpu_custom_call.1
$region0: #{tpu_custom_call.1}
  #allocation0 [shape = 'u32[]', space=smem, size = 0x4, offset = 0x4, fixed_abs, tag = 'smem constant byte address 0x4 - core index']
  #allocation1 [shape = 'u32[144,128]{1,0:T(1,128)}', space=vmem, size = 0x12000, scoped, tag = 'internal scratch']
  %s0 = inlined_call_operand.vmem [shape: bf16[2,32,256], index: 0, kind: input, shape index: {}]
  %s1 = inlined_call_operand.vmem [shape: bf16[80,32], index: 1, kind: input, shape index: {}]
  %s2 = inlined_call_operand.vmem [shape: f32[80,1], index: 2, kind: input, shape index: {}]
  %s3 = inlined_call_operand.hbm [shape: bf16[2,16,256], index: 3, kind: output, shape index: {0}]
  %s4 = inlined_call_operand.hbm [shape: bf16[2,16,256], index: 4, kind: output, shape index: {1}]
  %s5 = inlined_call_operand.hbm [shape: bf16[2,48,256], index: 5, kind: output, shape index: {2}]
  %6 = xla_tuple %s3, %s4, %s5
  %s7 = sld [smem:[#allocation0]]
  $region102: #{tpu_custom_call.1} parent=0
    _
  %s9 = ssub.s32 1, %s7
  %s10 = scalar_select 0, %s9, %s7
  $region1: #{tpu_custom_call.1} parent=0
    #allocation2 [shape = 'u8[16384]{0}', space=vmem, size = 0x4000, scoped, tag = 'input window, operand 0']
    #allocation3 [shape = 'u8[8192]{0}', space=vmem, size = 0x2000, scoped, tag = 'output window, operand 0']
    #allocation4 [shape = 's32[2]{0}', space=sflag, size = 0x8, scoped, tag = 'scoped memory for tpu_custom_call.1']
    #allocation5 [shape = 'u8[8192]{0}', space=vmem, size = 0x2000, scoped, tag = 'output window, operand 1']
    #allocation6 [shape = 's32[2]{0}', space=sflag, size = 0x8, scoped, tag = 'scoped memory for tpu_custom_call.1']
    #allocation7 [shape = 'u8[24576]{0}', space=vmem, size = 0x6000, scoped, tag = 'output window, operand 2']
    %11 = vsyncpa [#allocation4], 0
    %s12 = scalar_lea.sflag [#allocation4], 1
    %13 = vsyncpa %s12, 0
    %14 = vsyncpa [#allocation6], 0
    %s15 = scalar_lea.sflag [#allocation6], 1
    %16 = vsyncpa %s15, 0
    loop: start=0, step=1, limit=6
    $region2: #{tpu_custom_call.1} parent=1 // loop_pre_header
      _
    $region3: #{tpu_custom_call.1} parent=1 // loop_header
      %s18 = sphi 0, %s22
      %p19 = scmp.ge.s32.totalorder %s18, 6
      %s25 = sphi 0, %s37
      %s26 = sphi 0, %s33
      %s27 = sphi 0, %s25
      %s28 = sphi 0, %s26
      %s29 = sphi 0, %s27
      %s30 = sphi 0, %s28
      %s42 = sphi 0, %s44
      %s45 = sphi 0, %s42
      %s46 = sphi 0, %s45
      %s62 = sphi 0, %s46
      %s66 = sphi 0, %s66
      %s68 = sphi 0, %s66
      %s69 = sphi 0, %s68
      %s83 = sphi 0, %s69
      %s87 = sphi 0, %s87
      %s89 = sphi 0, %s87
      %s90 = sphi 0, %s89
      %s104 = sphi 0, %s90
      %s112 = sphi 0, %s114
      %s115 = sphi 0, %s112
      %s116 = sphi 0, %s115
      %s132 = sphi 0, %s116
      %s140 = sphi 0, %s142
      %s143 = sphi 0, %s140
      %s144 = sphi 0, %s143
      %s160 = sphi 0, %s144
      %s168 = sphi 0, %s170
      %s171 = sphi 0, %s168
      %s172 = sphi 0, %s171
      %s188 = sphi 0, %s172
    $region4: #{tpu_custom_call.1} parent=1 // loop_header_branch
      %21 = sbr.rel (%p19) target = $region8
    $region5: #{tpu_custom_call.1} parent=1 // loop_body
      %s23 = ssub.s32 %s18, 1
      %s24 = ssub.s32 %s18, 2
      %s31 = sadd.s32 1, %s26
      %p32 = scmp.ge.s32.totalorder %s31, 2
      %s33 = scalar_select %p32, 0, %s31
      %s34 = sadd.s32 1, %s25
      %s35 = scalar_select %p32, %s34, %s25
      %p36 = scmp.ge.s32.totalorder %s35, 2
      %s37 = scalar_select %p36, 0, %s35
      %s38 = ssub.s32 %s25, %s37
      %s39 = ssub.s32 %s26, %s33
      %s40 = sor.u32 %s38, %s39
      %p41 = scmp.eq.s32.totalorder %s40, 0
      %s43 = sadd.s32 %s42, 1
      %s44 = scalar_select %p41, %s42, %s43
      %p47 = pneg %p41
      %p48 = scmp.eq.s32.totalorder %s18, 3
      %p49 = por %p47, %p48
      %p50 = scmp.ne.s32.totalorder %s42, %s45
      %p51 = scmp.eq.s32.totalorder %s18, 0
      %p52 = por %p50, %p51
      %p53 = scmp.ne.s32.totalorder %s42, %s45
      %p54 = scmp.eq.s32.totalorder %s23, 3
      %p55 = por %p53, %p54
      %p56 = scmp.ne.s32.totalorder %s45, %s46
      %p57 = scmp.eq.s32.totalorder %s23, 0
      %p58 = por %p56, %p57
      %p59 = scmp.ne.s32.totalorder %s45, %s46
      %p60 = scmp.eq.s32.totalorder %s24, 3
      %p61 = por %p59, %p60
      %p63 = scmp.ne.s32.totalorder %s46, %s62
      %p64 = scmp.eq.s32.totalorder %s24, 0
      %p65 = por %p63, %p64
      %s67 = sadd.s32 %s66, 1
      %p70 = scmp.eq.s32.totalorder %s18, 3
      %p71 = scmp.ne.s32.totalorder %s66, %s68
      %p72 = scmp.eq.s32.totalorder %s18, 0
      %p73 = por %p71, %p72
      %p74 = scmp.ne.s32.totalorder %s66, %s68
      %p75 = scmp.eq.s32.totalorder %s23, 3
      %p76 = por %p74, %p75
      %p77 = scmp.ne.s32.totalorder %s68, %s69
      %p78 = scmp.eq.s32.totalorder %s23, 0
      %p79 = por %p77, %p78
      %p80 = scmp.ne.s32.totalorder %s68, %s69
      %p81 = scmp.eq.s32.totalorder %s24, 3
      %p82 = por %p80, %p81
      %p84 = scmp.ne.s32.totalorder %s69, %s83
      %p85 = scmp.eq.s32.totalorder %s24, 0
      %p86 = por %p84, %p85
      %s88 = sadd.s32 %s87, 1
      %p91 = scmp.eq.s32.totalorder %s18, 3
      %p92 = scmp.ne.s32.totalorder %s87, %s89
      %p93 = scmp.eq.s32.totalorder %s18, 0
      %p94 = por %p92, %p93
      %p95 = scmp.ne.s32.totalorder %s87, %s89
      %p96 = scmp.eq.s32.totalorder %s23, 3
      %p97 = por %p95, %p96
      %p98 = scmp.ne.s32.totalorder %s89, %s90
      %p99 = scmp.eq.s32.totalorder %s23, 0
      %p100 = por %p98, %p99
      %p101 = scmp.ne.s32.totalorder %s89, %s90
      %p102 = scmp.eq.s32.totalorder %s24, 3
      %p103 = por %p101, %p102
      %p105 = scmp.ne.s32.totalorder %s90, %s104
      %p106 = scmp.eq.s32.totalorder %s24, 0
      %p107 = por %p105, %p106
      %s108 = ssub.s32 %s25, %s37
      %s109 = ssub.s32 %s26, %s33
      %s110 = sor.u32 %s108, %s109
      %p111 = scmp.eq.s32.totalorder %s110, 0
      %s113 = sadd.s32 %s112, 1
      %s114 = scalar_select %p111, %s112, %s113
      %p117 = pneg %p111
      %p118 = scmp.eq.s32.totalorder %s18, 3
      %p119 = por %p117, %p118
      %p120 = scmp.ne.s32.totalorder %s112, %s115
      %p121 = scmp.eq.s32.totalorder %s18, 0
      %p122 = por %p120, %p121
      %p123 = scmp.ne.s32.totalorder %s112, %s115
      %p124 = scmp.eq.s32.totalorder %s23, 3
      %p125 = por %p123, %p124
      %p126 = scmp.ne.s32.totalorder %s115, %s116
      %p127 = scmp.eq.s32.totalorder %s23, 0
      %p128 = por %p126, %p127
      %p129 = scmp.ne.s32.totalorder %s115, %s116
      %p130 = scmp.eq.s32.totalorder %s24, 3
      %p131 = por %p129, %p130
      %p133 = scmp.ne.s32.totalorder %s116, %s132
      %p134 = scmp.eq.s32.totalorder %s24, 0
      %p135 = por %p133, %p134
      %s136 = ssub.s32 %s25, %s37
      %s137 = ssub.s32 %s26, %s33
      %s138 = sor.u32 %s136, %s137
      %p139 = scmp.eq.s32.totalorder %s138, 0
      %s141 = sadd.s32 %s140, 1
      %s142 = scalar_select %p139, %s140, %s141
      %p145 = pneg %p139
      %p146 = scmp.eq.s32.totalorder %s18, 3
      %p147 = por %p145, %p146
      %p148 = scmp.ne.s32.totalorder %s140, %s143
      %p149 = scmp.eq.s32.totalorder %s18, 0
      %p150 = por %p148, %p149
      %p151 = scmp.ne.s32.totalorder %s140, %s143
      %p152 = scmp.eq.s32.totalorder %s23, 3
      %p153 = por %p151, %p152
      %p154 = scmp.ne.s32.totalorder %s143, %s144
      %p155 = scmp.eq.s32.totalorder %s23, 0
      %p156 = por %p154, %p155
      %p157 = scmp.ne.s32.totalorder %s143, %s144
      %p158 = scmp.eq.s32.totalorder %s24, 3
      %p159 = por %p157, %p158
      %p161 = scmp.ne.s32.totalorder %s144, %s160
      %p162 = scmp.eq.s32.totalorder %s24, 0
      %p163 = por %p161, %p162
      %s164 = ssub.s32 %s25, %s37
      %s165 = ssub.s32 %s26, %s33
      %s166 = sor.u32 %s164, %s165
      %p167 = scmp.eq.s32.totalorder %s166, 0
      %s169 = sadd.s32 %s168, 1
      %s170 = scalar_select %p167, %s168, %s169
      %p173 = pneg %p167
      %p174 = scmp.eq.s32.totalorder %s18, 3
      %p175 = por %p173, %p174
      %p176 = scmp.ne.s32.totalorder %s168, %s171
      %p177 = scmp.eq.s32.totalorder %s18, 0
      %p178 = por %p176, %p177
      %p179 = scmp.ne.s32.totalorder %s168, %s171
      %p180 = scmp.eq.s32.totalorder %s23, 3
      %p181 = por %p179, %p180
      %p182 = scmp.ne.s32.totalorder %s171, %s172
      %p183 = scmp.eq.s32.totalorder %s23, 0
      %p184 = por %p182, %p183
      %p185 = scmp.ne.s32.totalorder %s171, %s172
      %p186 = scmp.eq.s32.totalorder %s24, 3
      %p187 = por %p185, %p186
      %p189 = scmp.ne.s32.totalorder %s172, %s188
      %p190 = scmp.eq.s32.totalorder %s24, 0
      %p191 = por %p189, %p190
      %p192 = scmp.le.s32.totalorder 1, %s18
      %p193 = scmp.lt.s32.totalorder %s18, 5
      %p194 = pnand %p192, %p193
      %p195 = pneg %p194
      // Predicated region
      $region9: #{tpu_custom_call.1} parent=5 // pred_check
        _
      $region10: #{tpu_custom_call.1} parent=5 // pred_check_branch
        %197 = sbr.rel (%p194) target = $region12
      $region11: #{tpu_custom_call.1} parent=5 // pred_region
        %s198 = ssub.s32 %s18, 1
        // Predicated region
        $region13: #{tpu_custom_call.1} parent=11 // pred_check
          %p199 = pneg %p79
        $region14: #{tpu_custom_call.1} parent=11 // pred_check_branch
          %201 = sbr.rel (%p199) target = $region16
        $region15: #{tpu_custom_call.1} parent=11 // pred_region
          _
        $region16: #{tpu_custom_call.1} parent=11 // pred_fallthru
          _
        // Predicated region
        $region17: #{tpu_custom_call.1} parent=11 // pred_check
          %p202 = pneg %p100
        $region18: #{tpu_custom_call.1} parent=11 // pred_check_branch
          %204 = sbr.rel (%p202) target = $region20
        $region19: #{tpu_custom_call.1} parent=11 // pred_region
          _
        $region20: #{tpu_custom_call.1} parent=11 // pred_fallthru
          _
      $region12: #{tpu_custom_call.1} parent=5 // pred_fallthru
        _
      %p205 = scmp.lt.s32.totalorder %s18, 4
      // Predicated region
      $region21: #{tpu_custom_call.1} parent=5 // pred_check
        %p206 = pneg %p205
      $region22: #{tpu_custom_call.1} parent=5 // pred_check_branch
        %208 = sbr.rel (%p206) target = $region24
      $region23: #{tpu_custom_call.1} parent=5 // pred_region
        // Predicated region
        $region25: #{tpu_custom_call.1} parent=23 // pred_check
          %p209 = pneg %p52
        $region26: #{tpu_custom_call.1} parent=23 // pred_check_branch
          %211 = sbr.rel (%p209) target = $region28
        $region27: #{tpu_custom_call.1} parent=23 // pred_region
          %s212 = sand.u32 %s42, 1
          %s213 = sand.u32 %s42, 1
          %s214 = smul.addr %s213, 16
          %s215 = scalar_lea.vmem [#allocation2], %s214
          %s216 = smul.addr %s25, 8
          %s217 = sadd.s32 %s26, %s216
          %s218 = smul.addr %s217, 4
          %s219 = scalar_lea.vmem %s0, %s218
          // Predicated region
          $region29: #{tpu_custom_call.1} parent=27 // pred_check
            _
          $region30: #{tpu_custom_call.1} parent=27 // pred_check_branch
            %221 = sbr.rel (0) target = $region32
          $region31: #{tpu_custom_call.1} parent=27 // pred_region
            // Predicated region
            $region33: #{tpu_custom_call.1} parent=31 // pred_check
              _
            $region34: #{tpu_custom_call.1} parent=31 // pred_check_branch
              %223 = sbr.rel target = $region36
            $region35: #{tpu_custom_call.1} parent=31 // pred_region
              // Predicated region
              $region48: #{tpu_custom_call.1} parent=35 // pred_check
                _
              $region49: #{tpu_custom_call.1} parent=35 // pred_check_branch
                %245 = sbr.rel (0) target = $region51
              $region50: #{tpu_custom_call.1} parent=35 // pred_region
                loop: start=0, step=1, limit=1
                $region52: #{tpu_custom_call.1} parent=50 // loop_pre_header
                  _
                $region53: #{tpu_custom_call.1} parent=50 // loop_header
                  %s247 = sphi 0, %s251
                  %p248 = scmp.ge.s32.totalorder %s247, 1
                  %s252 = sphi %s219, %s219
                  %s253 = sphi %s215, %s215
                $region54: #{tpu_custom_call.1} parent=50 // loop_header_branch
                  %250 = sbr.rel (%p248) target = $region58
                $region55: #{tpu_custom_call.1} parent=50 // loop_body
                  _
                $region56: #{tpu_custom_call.1} parent=50 // loop_footer
                  %s251 = sadd.s32 1, %s247
                $region57: #{tpu_custom_call.1} parent=50 // loop_footer_branch
                  %246 = sbr.rel target = $region53
                $region58: #{tpu_custom_call.1} parent=50 // loop_exit
                  _
                %s255 = ssub.s32 16, 1
                loop: start=0, step=1, limit=1
                $region59: #{tpu_custom_call.1} parent=50 // loop_pre_header
                  _
                $region60: #{tpu_custom_call.1} parent=50 // loop_header
                  %s257 = sphi 0, %s261
                  %p258 = scmp.ge.s32.totalorder %s257, 1
                  %s262 = sphi %s219, %s219
                  %s263 = sphi %s215, %s215
                $region61: #{tpu_custom_call.1} parent=50 // loop_header_branch
                  %260 = sbr.rel (%p258) target = $region65
                $region62: #{tpu_custom_call.1} parent=50 // loop_body
                  %v264 = vld [vmem:[%s262] sm:%s255]
                  %265 = vst [vmem:[%s263] sm:%s255] %v264
                  %v266 = vld [vmem:[%s262 + $0x8] sm:%s255]
                  %267 = vst [vmem:[%s263 + $0x4] sm:%s255] %v266
                  %v268 = vld [vmem:[%s262 + $0x10] sm:%s255]
                  %269 = vst [vmem:[%s263 + $0x8] sm:%s255] %v268
                  %v270 = vld [vmem:[%s262 + $0x18] sm:%s255]
                  %271 = vst [vmem:[%s263 + $0xc] sm:%s255] %v270
                $region63: #{tpu_custom_call.1} parent=50 // loop_footer
                  %s261 = sadd.s32 1, %s257
                $region64: #{tpu_custom_call.1} parent=50 // loop_footer_branch
                  %256 = sbr.rel target = $region60
                $region65: #{tpu_custom_call.1} parent=50 // loop_exit
                  _
              $region51: #{tpu_custom_call.1} parent=35 // pred_fallthru
                _
            $region36: #{tpu_custom_call.1} parent=31 // pred_fallthru
              _
            // Predicated region
            $region37: #{tpu_custom_call.1} parent=31 // pred_check
              _
            $region38: #{tpu_custom_call.1} parent=31 // pred_check_branch
              %225 = sbr.rel (0) target = $region40
            $region39: #{tpu_custom_call.1} parent=31 // pred_region
              %s227 = ssub.s32 16, 1
              loop: start=0, step=1, limit=1
              $region41: #{tpu_custom_call.1} parent=39 // loop_pre_header
                _
              $region42: #{tpu_custom_call.1} parent=39 // loop_header
                %s229 = sphi 0, %s233
                %p230 = scmp.ge.s32.totalorder %s229, 1
                %s234 = sphi %s219, %s219
                %s235 = sphi %s215, %s215
              $region43: #{tpu_custom_call.1} parent=39 // loop_header_branch
                %232 = sbr.rel (%p230) target = $region47
              $region44: #{tpu_custom_call.1} parent=39 // loop_body
                %v236 = vld [vmem:[%s234] sm:%s227]
                %237 = vst [vmem:[%s235] sm:%s227] %v236
                %v238 = vld [vmem:[%s234 + $0x8] sm:%s227]
                %239 = vst [vmem:[%s235 + $0x4] sm:%s227] %v238
                %v240 = vld [vmem:[%s234 + $0x10] sm:%s227]
                %241 = vst [vmem:[%s235 + $0x8] sm:%s227] %v240
                %v242 = vld [vmem:[%s234 + $0x18] sm:%s227]
                %243 = vst [vmem:[%s235 + $0xc] sm:%s227] %v242
              $region45: #{tpu_custom_call.1} parent=39 // loop_footer
                %s233 = sadd.s32 1, %s229
              $region46: #{tpu_custom_call.1} parent=39 // loop_footer_branch
                %228 = sbr.rel target = $region42
              $region47: #{tpu_custom_call.1} parent=39 // loop_exit
                _
            $region40: #{tpu_custom_call.1} parent=31 // pred_fallthru
              _
          $region32: #{tpu_custom_call.1} parent=27 // pred_fallthru
            _
          %272 = vnop
        $region28: #{tpu_custom_call.1} parent=23 // pred_fallthru
          _
      $region24: #{tpu_custom_call.1} parent=5 // pred_fallthru
        _
      %p273 = scmp.le.s32.totalorder 1, %s18
      %p274 = scmp.lt.s32.totalorder %s18, 5
      %p275 = pnand %p273, %p274
      %p276 = pneg %p275
      // Predicated region
      $region66: #{tpu_custom_call.1} parent=5 // pred_check
        _
      $region67: #{tpu_custom_call.1} parent=5 // pred_check_branch
        %278 = sbr.rel (%p275) target = $region69
      $region68: #{tpu_custom_call.1} parent=5 // pred_region
        %s279 = ssub.s32 %s18, 1
        %s280 = sand.u32 %s45, 1
        %s281 = sand.u32 %s45, 1
        %s282 = smul.addr %s281, 16
        %s283 = scalar_lea.vmem [#allocation2], %s282
        // Predicated region
        $region70: #{tpu_custom_call.1} parent=68 // pred_check
          %p284 = pneg %p58
        $region71: #{tpu_custom_call.1} parent=68 // pred_check_branch
          %286 = sbr.rel (%p284) target = $region73
        $region72: #{tpu_custom_call.1} parent=68 // pred_region
          _
        $region73: #{tpu_custom_call.1} parent=68 // pred_fallthru
          _
        %s287 = sand.u32 %s45, 1
        %s288 = sand.u32 %s45, 1
        %s289 = smul.addr %s288, 16
        %s290 = scalar_lea.vmem [#allocation2], %s289
        %p291 = pneg %p58
        %p292 = pneg %p55
        %p293 = pneg %p79
        %p294 = pneg %p76
        %p295 = pneg %p100
        %p296 = pneg %p97
        %p297 = pneg %p128
        %p298 = pneg %p125
        %s299 = sand.u32 %s115, 1
        %s300 = scalar_lea.sflag [#allocation4], %s299
        %s301 = sand.u32 %s115, 1
        %s302 = smul.addr %s301, 8
        %s303 = scalar_lea.vmem [#allocation3], %s302
        %p304 = pneg %p156
        %p305 = pneg %p153
        %s306 = sand.u32 %s23, 1
        %s307 = scalar_lea.sflag [#allocation6], %s306
        %s308 = sand.u32 %s143, 1
        %s309 = smul.addr %s308, 8
        %s310 = scalar_lea.vmem [#allocation5], %s309
        %p311 = pneg %p184
        %p312 = pneg %p181
        %s313 = sand.u32 %s23, 1
        %s314 = scalar_lea.sflag [#allocation6], %s313
        %s315 = sand.u32 %s171, 1
        %s316 = smul.addr %s315, 24
        %s317 = scalar_lea.vmem [#allocation7], %s316
        %v319 = vld [vmem:[%s1] sm:$0xf]
        %v320 = vld [vmem:[%s1 + $0x4] sm:$0xf]
        %v321 = vld [vmem:[%s1 + $0x8] sm:$0xf]
        %v322 = vld [vmem:[%s1 + $0xc] sm:$0xf]
        %v323 = vld [vmem:[%s1 + $0x10] sm:$0xf]
        %v324 = vld [vmem:[%s1 + $0x14] sm:$0xf]
        %v325 = vld [vmem:[%s1 + $0x18] sm:$0xf]
        %v326 = vld [vmem:[%s1 + $0x1c] sm:$0xf]
        %v327 = vld [vmem:[%s1 + $0x20] sm:$0xf]
        %v328 = vld [vmem:[%s1 + $0x24] sm:$0xf]
        %v329 = vld [vmem:[%s283] sm:$0xf]
        %v330 = vld [vmem:[%s283 + $0x4] sm:$0xf]
        %v331 = vld [vmem:[%s283 + $0x8] sm:$0xf]
        %v332 = vld [vmem:[%s283 + $0xc] sm:$0xf]
        %v333 = vld [vmem:[%s2] sm:$0xff]
        %v334 = vld [vmem:[%s2 + $0x8] sm:$0xff]
        %v335 = vld [vmem:[%s2 + $0x10] sm:$0xff]
        %v336 = vld [vmem:[%s2 + $0x18] sm:$0xff]
        %v337 = vld [vmem:[%s2 + $0x20] sm:$0xff]
        %v338 = vld [vmem:[%s2 + $0x28] sm:$0xff]
        %v339 = vld [vmem:[%s2 + $0x30] sm:$0xff]
        %v340 = vld [vmem:[%s2 + $0x38] sm:$0xff]
        %v341 = vld [vmem:[%s2 + $0x40] sm:$0xff]
        %v342 = vld [vmem:[%s2 + $0x48] sm:$0xff]
        %344 = vset.pattern.permute.xlu0 0
        %345 = vperm.xlu0 %344, %v333
        %v346 = vpop.permute.xlu0 %345
        %349 = vset.pattern.permute.xlu0 0
        %350 = vperm.xlu0 %349, %v334
        %v351 = vpop.permute.xlu0 %350
        %354 = vset.pattern.permute.xlu0 0
        %355 = vperm.xlu0 %354, %v335
        %v356 = vpop.permute.xlu0 %355
        %359 = vset.pattern.permute.xlu0 0
        %360 = vperm.xlu0 %359, %v336
        %v361 = vpop.permute.xlu0 %360
        %364 = vset.pattern.permute.xlu0 0
        %365 = vperm.xlu0 %364, %v337
        %v366 = vpop.permute.xlu0 %365
        %369 = vset.pattern.permute.xlu0 0
        %370 = vperm.xlu0 %369, %v338
        %v371 = vpop.permute.xlu0 %370
        %374 = vset.pattern.permute.xlu0 0
        %375 = vperm.xlu0 %374, %v339
        %v376 = vpop.permute.xlu0 %375
        %379 = vset.pattern.permute.xlu0 0
        %380 = vperm.xlu0 %379, %v340
        %v381 = vpop.permute.xlu0 %380
        %384 = vset.pattern.permute.xlu0 0
        %385 = vperm.xlu0 %384, %v341
        %v386 = vpop.permute.xlu0 %385
        %389 = vset.pattern.permute.xlu0 0
        %390 = vperm.xlu0 %389, %v342
        %v391 = vpop.permute.xlu0 %390
        %v403 = vunpack.c.l.b16 %v319
        %v404 = vunpack.c.l.b16 %v320
        %v405 = vunpack.c.l.b16 %v321
        %v406 = vunpack.c.l.b16 %v322
        %v407 = vunpack.c.l.b16 %v323
        %v408 = vunpack.c.l.b16 %v324
        %v409 = vunpack.c.l.b16 %v325
        %v410 = vunpack.c.l.b16 %v326
        %v411 = vunpack.c.l.b16 %v327
        %v412 = vunpack.c.l.b16 %v328
        %v413 = vpack.c.b16 %v404, %v403
        %v414 = vpack.c.b16 %v406, %v405
        %v415 = vpack.c.b16 %v408, %v407
        %v416 = vpack.c.b16 %v410, %v409
        %v417 = vpack.c.b16 %v412, %v411
        %v422 = vunpack.c.l.b16 %v329
        %v423 = vunpack.c.l.b16 %v330
        %v424 = vunpack.c.l.b16 %v331
        %v425 = vunpack.c.l.b16 %v332
        %v426 = vpack.c.b16 %v423, %v422
        %v427 = vpack.c.b16 %v425, %v424
        %vm430 = vcmask 261120
        %v432 = vsel %vm430, %v413, 0
        %v435 = vsel %vm430, %v414, 0
        %v438 = vsel %vm430, %v415, 0
        %v441 = vsel %vm430, %v416, 0
        %v444 = vsel %vm430, %v417, 0
        %446 = vmatprep.subr.bf16.mxu0 0
        %447 = vmatpush1.bf16.msra.mxu0 0
        %448 = vmatprep.subr.bf16.mxu0 0
        %449 = vmatpush1.bf16.msra.mxu0 0
        %450 = vmatprep.subr.bf16.mxu0 0
        %451 = vmatpush1.bf16.msra.mxu0 0
        %452 = vmatprep.subr.bf16.mxu0 0
        %453 = vmatpush1.bf16.msra.mxu0 0
        %454 = vmatprep.subr.bf16.mxu0 0
        %455 = vmatpush1.bf16.msra.mxu0 0
        %456 = vmatprep.subr.bf16.mxu0 0
        %457 = vmatpush1.bf16.msra.mxu0 0
        %458 = vmatprep.subr.bf16.mxu0 0
        %459 = vmatpush1.bf16.msra.mxu0 %v427
        %460 = vmatprep.subr.bf16.mxu0 0
        %461 = vmatpush1.bf16.msra.mxu0 %v426
        %462 = vmatprep.subr.bf16.mxu0 0
        %463 = vmatpush2.bf16.msra.mxu0 0
        %464 = vmatprep.subr.bf16.mxu0 0
        %465 = vmatpush2.bf16.msra.mxu0 0
        %466 = vmatprep.subr.bf16.mxu0 0
        %467 = vmatpush2.bf16.msra.mxu0 0
        %468 = vmatprep.subr.bf16.mxu0 0
        %469 = vmatpush2.bf16.msra.mxu0 0
        %470 = vmatprep.subr.bf16.mxu0 0
        %471 = vmatpush2.bf16.msra.mxu0 0
        %472 = vmatprep.subr.bf16.mxu0 0
        %473 = vmatpush2.bf16.msra.mxu0 0
        %474 = vmatprep.subr.bf16.mxu0 0
        %475 = vmatpush2.bf16.msra.mxu0 0
        %476 = vmatprep.subr.bf16.mxu0 0
        %477 = vmatpush2.bf16.msra.mxu0 0
        %478 = vmatprep.mubr.bf16.mxu0 0
        %479 = vmatmul.mubr.bf16.gmra.mxu0 %v432
        %v480 = vpop.f32.mrf.mxu0
        %v481 = vadd.f32 %v346, %v480
        %v482 = vpop.f32.mrf.mxu0
        %v483 = vpop.f32.mrf.mxu0
        %v484 = vadd.f32 %v351, %v483
        %v485 = vpop.f32.mrf.mxu0
        %486 = vmatprep.mubr.bf16.mxu0 0
        %487 = vmatmul.mubr.bf16.gmra.mxu0 %v435
        %v488 = vpop.f32.mrf.mxu0
        %v489 = vadd.f32 %v356, %v488
        %v490 = vpop.f32.mrf.mxu0
        %v491 = vpop.f32.mrf.mxu0
        %v492 = vadd.f32 %v361, %v491
        %v493 = vpop.f32.mrf.mxu0
        %494 = vmatprep.mubr.bf16.mxu0 0
        %495 = vmatmul.mubr.bf16.gmra.mxu0 %v438
        %v496 = vpop.f32.mrf.mxu0
        %v497 = vadd.f32 %v366, %v496
        %v498 = vpop.f32.mrf.mxu0
        %v499 = vpop.f32.mrf.mxu0
        %v500 = vadd.f32 %v371, %v499
        %v501 = vpop.f32.mrf.mxu0
        %502 = vmatprep.mubr.bf16.mxu0 0
        %503 = vmatmul.mubr.bf16.gmra.mxu0 %v441
        %v504 = vpop.f32.mrf.mxu0
        %v505 = vadd.f32 %v376, %v504
        %v506 = vpop.f32.mrf.mxu0
        %v507 = vpop.f32.mrf.mxu0
        %v508 = vadd.f32 %v381, %v507
        %v509 = vpop.f32.mrf.mxu0
        %510 = vmatprep.mubr.bf16.mxu0 0
        %511 = vmatmul.mubr.bf16.gmra.mxu0 %v444
        %v512 = vpop.f32.mrf.mxu0
        %v513 = vadd.f32 %v386, %v512
        %v514 = vpop.f32.mrf.mxu0
        %v515 = vpop.f32.mrf.mxu0
        %v516 = vadd.f32 %v391, %v515
        %v517 = vpop.f32.mrf.mxu0
        %518 = vdwg.mxu0
        %v519 = vpack.c.bf16 %v484, %v481
        %v521 = vunpack.c.l.b16 %v519
        %v522 = vunpack.c.h.b16 %v519
        %v523 = vpack.c.b16 %v521, %v521
        %v524 = vpack.c.b16 %v522, %v522
        %527 = vst [vmem:[%s303] sm:$0xf] %v523
        %528 = vst [vmem:[%s303 + $0x4] sm:$0xf] %v524
        %v529 = vpack.c.bf16 %v492, %v489
        %v531 = vunpack.c.l.b16 %v529
        %v532 = vunpack.c.h.b16 %v529
        %v533 = vpack.c.b16 %v531, %v531
        %v534 = vpack.c.b16 %v532, %v532
        %537 = vst [vmem:[%s310] sm:$0xf] %v533
        %538 = vst [vmem:[%s310 + $0x4] sm:$0xf] %v534
        %v539 = vpack.c.bf16 %v500, %v497
        %v540 = vpack.c.bf16 %v508, %v505
        %v541 = vpack.c.bf16 %v516, %v513
        %v545 = vunpack.c.l.b16 %v539
        %v546 = vunpack.c.h.b16 %v539
        %v547 = vunpack.c.l.b16 %v540
        %v548 = vunpack.c.h.b16 %v540
        %v549 = vunpack.c.l.b16 %v541
        %v550 = vunpack.c.h.b16 %v541
        %v551 = vpack.c.b16 %v545, %v545
        %v552 = vpack.c.b16 %v546, %v546
        %v553 = vpack.c.b16 %v547, %v547
        %v554 = vpack.c.b16 %v548, %v548
        %v555 = vpack.c.b16 %v549, %v549
        %v556 = vpack.c.b16 %v550, %v550
        %563 = vst [vmem:[%s317] sm:$0xf] %v551
        %564 = vst [vmem:[%s317 + $0x4] sm:$0xf] %v552
        %565 = vst [vmem:[%s317 + $0x8] sm:$0xf] %v553
        %566 = vst [vmem:[%s317 + $0xc] sm:$0xf] %v554
        %567 = vst [vmem:[%s317 + $0x10] sm:$0xf] %v555
        %568 = vst [vmem:[%s317 + $0x14] sm:$0xf] %v556
        %s569 = sand.u32 %s115, 1
        %s570 = scalar_lea.sflag [#allocation4], %s569
        %s571 = sand.u32 %s115, 1
        %s572 = smul.addr %s571, 8
        %s573 = scalar_lea.vmem [#allocation3], %s572
        %s574 = sand.u32 %s23, 1
        %s575 = scalar_lea.sflag [#allocation6], %s574
        %s576 = sand.u32 %s143, 1
        %s577 = smul.addr %s576, 8
        %s578 = scalar_lea.vmem [#allocation5], %s577
        %s579 = sand.u32 %s23, 1
        %s580 = scalar_lea.sflag [#allocation6], %s579
        %s581 = sand.u32 %s171, 1
        %s582 = smul.addr %s581, 24
        %s583 = scalar_lea.vmem [#allocation7], %s582
        // Predicated region
        $region74: #{tpu_custom_call.1} parent=68 // pred_check
          %p584 = pneg %p125
        $region75: #{tpu_custom_call.1} parent=68 // pred_check_branch
          %586 = sbr.rel (%p584) target = $region77
        $region76: #{tpu_custom_call.1} parent=68 // pred_region
          %s588 = ssub.s32 128, 128
          %589 = vsyncadd %s570, %s588
          %s590 = smul.addr %s27, 4
          %s591 = sadd.s32 %s28, %s590
          %s592 = smul.addr %s591, 64
          %s593 = scalar_lea.hbm %s3, %s592
          %s594 = sshll.u32 %s573, 4
          %s595 = int_to_ptr.vmem [resolvable:$true] %s594
          %600 = dma.vmem_to_hbm [thread:$0]  %s595, 128, %s593, %s570, 64, 128, 4
        $region77: #{tpu_custom_call.1} parent=68 // pred_fallthru
          _
        // Predicated region
        $region78: #{tpu_custom_call.1} parent=68 // pred_check
          %p601 = pneg %p153
        $region79: #{tpu_custom_call.1} parent=68 // pred_check_branch
          %603 = sbr.rel (%p601) target = $region81
        $region80: #{tpu_custom_call.1} parent=68 // pred_region
          %s605 = ssub.s32 128, 128
          %606 = vsyncadd %s575, %s605
          %s607 = smul.addr %s27, 4
          %s608 = sadd.s32 %s28, %s607
          %s609 = smul.addr %s608, 64
          %s610 = scalar_lea.hbm %s4, %s609
          %s611 = sshll.u32 %s578, 4
          %s612 = int_to_ptr.vmem [resolvable:$true] %s611
          %617 = dma.vmem_to_hbm [thread:$0]  %s612, 128, %s610, %s575, 64, 128, 4
        $region81: #{tpu_custom_call.1} parent=68 // pred_fallthru
          _
        // Predicated region
        $region82: #{tpu_custom_call.1} parent=68 // pred_check
          %p618 = pneg %p181
        $region83: #{tpu_custom_call.1} parent=68 // pred_check_branch
          %620 = sbr.rel (%p618) target = $region85
        $region84: #{tpu_custom_call.1} parent=68 // pred_region
          %s622 = ssub.s32 384, 384
          %623 = vsyncadd %s580, %s622
          %s624 = smul.addr %s27, 12
          %s625 = sadd.s32 %s28, %s624
          %s626 = smul.addr %s625, 64
          %s627 = scalar_lea.hbm %s5, %s626
          %s628 = sshll.u32 %s583, 4
          %s629 = int_to_ptr.vmem [resolvable:$true] %s628
          %634 = dma.vmem_to_hbm [thread:$0]  %s629, 384, %s627, %s580, 64, 128, 4
        $region85: #{tpu_custom_call.1} parent=68 // pred_fallthru
          _
      $region69: #{tpu_custom_call.1} parent=5 // pred_fallthru
        _
      %p635 = scmp.le.s32.totalorder 2, %s18
      // Predicated region
      $region86: #{tpu_custom_call.1} parent=5 // pred_check
        %p636 = pneg %p635
      $region87: #{tpu_custom_call.1} parent=5 // pred_check_branch
        %638 = sbr.rel (%p636) target = $region89
      $region88: #{tpu_custom_call.1} parent=5 // pred_region
        %s639 = ssub.s32 %s18, 2
        // Predicated region
        $region90: #{tpu_custom_call.1} parent=88 // pred_check
          %p640 = pneg %p131
        $region91: #{tpu_custom_call.1} parent=88 // pred_check_branch
          %642 = sbr.rel (%p640) target = $region93
        $region92: #{tpu_custom_call.1} parent=88 // pred_region
          %s643 = sand.u32 %s116, 1
          %s644 = scalar_lea.sflag [#allocation4], %s643
          %s645 = sand.u32 %s116, 1
          %s646 = smul.addr %s645, 8
          %s647 = scalar_lea.vmem [#allocation3], %s646
          %648 = dma.done %s644, 128
        $region93: #{tpu_custom_call.1} parent=88 // pred_fallthru
          _
        // Predicated region
        $region94: #{tpu_custom_call.1} parent=88 // pred_check
          %p649 = pneg %p159
        $region95: #{tpu_custom_call.1} parent=88 // pred_check_branch
          %651 = sbr.rel (%p649) target = $region97
        $region96: #{tpu_custom_call.1} parent=88 // pred_region
          %s652 = sand.u32 %s24, 1
          %s653 = scalar_lea.sflag [#allocation6], %s652
          %s654 = sand.u32 %s144, 1
          %s655 = smul.addr %s654, 8
          %s656 = scalar_lea.vmem [#allocation5], %s655
          %657 = dma.done %s653, 128
        $region97: #{tpu_custom_call.1} parent=88 // pred_fallthru
          _
        // Predicated region
        $region98: #{tpu_custom_call.1} parent=88 // pred_check
          %p658 = pneg %p187
        $region99: #{tpu_custom_call.1} parent=88 // pred_check_branch
          %660 = sbr.rel (%p658) target = $region101
        $region100: #{tpu_custom_call.1} parent=88 // pred_region
          %s661 = sand.u32 %s24, 1
          %s662 = scalar_lea.sflag [#allocation6], %s661
          %s663 = sand.u32 %s172, 1
          %s664 = smul.addr %s663, 24
          %s665 = scalar_lea.vmem [#allocation7], %s664
          %666 = dma.done %s662, 384
        $region101: #{tpu_custom_call.1} parent=88 // pred_fallthru
          _
      $region89: #{tpu_custom_call.1} parent=5 // pred_fallthru
        _
    $region6: #{tpu_custom_call.1} parent=1 // loop_footer
      %s22 = sadd.s32 1, %s18
    $region7: #{tpu_custom_call.1} parent=1 // loop_footer_branch
      %17 = sbr.rel target = $region3
    $region8: #{tpu_custom_call.1} parent=1 // loop_exit
      _
    %667 = vsyncpa [#allocation4], 1
    %s668 = scalar_lea.sflag [#allocation4], 1
    %669 = vsyncpa %s668, 1
    %670 = vsyncpa [#allocation6], 1
    %s671 = scalar_lea.sflag [#allocation6], 1
    %672 = vsyncpa %s671, 1

</llo_original>
